<compile_context>
chip_gen: v5e
topology: v5e:2x2
jax: 0.10.0
libtpu: 0.0.40
codegen_flags: <defaults>
</compile_context>

<pallas_src>
import jax
import jax.numpy as jnp
from jax.experimental import pallas as pl
from jax.experimental.pallas import tpu as pltpu

_LANE = 128


def _critic_kernel(x_ref,
                   w1_ref, b1_ref,
                   w2_ref, b2_ref,
                   w3_ref, b3_ref,
                   w4_ref, b4_ref,
                   o_ref):
    """One (tm, D) batch tile through the whole MLP.

    Layers 1-3: bf16 MXU matmuls with f32 accumulation; bias + ReLU in f32.
    Layer 4:    degenerate (H -> 1) projection done on VPU/XLU: transpose the
                activations once, multiply by the w4 column, reduce over the
                sublane (H) axis -> per-row values are lane-major, then each
                128-row chunk is written to one sublane row of the packed
                (tm // 128, 128) output block.
    """
    xb = x_ref[...].astype(jnp.bfloat16)

    h = jnp.dot(xb, w1_ref[...], preferred_element_type=jnp.float32) + b1_ref[...]
    h = jnp.maximum(h, 0.0)          # dropout -> identity (eval mode)

    h = jnp.dot(h.astype(jnp.bfloat16), w2_ref[...],
                preferred_element_type=jnp.float32) + b2_ref[...]
    h = jnp.maximum(h, 0.0)          # dropout -> identity (eval mode)

    h = jnp.dot(h.astype(jnp.bfloat16), w3_ref[...],
                preferred_element_type=jnp.float32) + b3_ref[...]
    h = jnp.maximum(h, 0.0)

    # Head: VPU multiply + XLU transpose / column-reduce (no 1-wide MXU matmul).
    hT = jnp.transpose(h)                                          # (H, tm)
    vrow = jnp.sum(hT * w4_ref[...], axis=0, keepdims=True) + b4_ref[0, 0]  # (1, tm)

    r = o_ref.shape[0]               # tm // 128, static
    for c in range(r):
        o_ref[pl.ds(c, 1), :] = vrow[:, c * _LANE:(c + 1) * _LANE].astype(o_ref.dtype)


def _round_up(n, m):
    return ((n + m - 1) // m) * m


@jax.jit
def critic_forward(x, params):
    """x: (B, input_size) f32. params: kernel-layout params (see prepare_params).

    Returns (B, 1) f32, matching PyTorch CriticNetwork.forward (eval mode).
    """
    B, D = x.shape
    H = params["w1"].shape[1]

    # Batch tiling: one tile (rounded to 128) for modest B; 1024-row tiles for
    # large B.  tm is always a multiple of 128 so the packed output works, and
    # tm = 1024 keeps the per-grid-step output block at (8, 128).
    if B <= 1024:
        tm = max(_LANE, _round_up(B, _LANE))
    else:
        tm = 1024
    b_pad = _round_up(B, tm)
    if b_pad != B:
        # Only pads when tm does not divide B (never for large aligned batches).
        x = jnp.pad(x, ((0, b_pad - B), (0, 0)))

    grid = (b_pad // tm,)
    r = tm // _LANE

    def resident(arr):
        # Constant index_map: DMA'd once, stays VMEM-resident across the grid.
        return pl.BlockSpec(arr.shape, lambda i: (0, 0))

    in_specs = [
        pl.BlockSpec((tm, D), lambda i: (i, 0)),                    # x tile
        resident(params["w1"]), resident(params["b1"]),
        resident(params["w2"]), resident(params["b2"]),
        resident(params["w3"]), resident(params["b3"]),
        resident(params["w4"]),                                     # (H, 1) f32
        pl.BlockSpec(memory_space=pltpu.MemorySpace.SMEM),          # b4 scalar
    ]

    # Raise the scoped VMEM limit only when actually needed (bf16 weights keep
    # the footprint small; v5e scoped default is 16 MiB, v7x physical is 64 MiB
    # per TensorCore and each core holds its own resident weight copy).
    weight_bytes = sum(int(v.size) * v.dtype.itemsize for v in params.values())
    est = 2 * weight_bytes + 4 * tm * (D + H + _LANE) * 4 + (2 << 20)
    compiler_kwargs = dict(dimension_semantics=("parallel",))
    if est > (16 << 20):
        compiler_kwargs["vmem_limit_bytes"] = int(min(est, 56 << 20))

    out = pl.pallas_call(
        _critic_kernel,
        out_shape=jax.ShapeDtypeStruct((b_pad // _LANE, _LANE), jnp.float32),
        grid=grid,
        in_specs=in_specs,
        out_specs=pl.BlockSpec((r, _LANE), lambda i: (i, 0)),
        compiler_params=pltpu.CompilerParams(**compiler_kwargs),
    )(x,
      params["w1"], params["b1"],
      params["w2"], params["b2"],
      params["w3"], params["b3"],
      params["w4"], params["b4"])

    # Packed (b_pad//128, 128) -> semantic (B, 1). Row-major reshape restores
    # batch order exactly as the kernel wrote it.
    return out.reshape(b_pad, 1)[:B]


def init_params(key, input_size, hidden_size):
    """Xavier-uniform weights, zero biases (matches _init_weights), f32 master copy.

    w1..w3 stored as (in, out) == transpose of PyTorch's (out, in).
    w4 stored as an (hidden, 1) column for the in-kernel VPU/XLU head.
    """
    def xavier(k, fan_in, fan_out, shape):
        bound = jnp.sqrt(6.0 / (fan_in + fan_out))
        return jax.random.uniform(k, shape, jnp.float32, -bound, bound)

    k1, k2, k3, k4 = jax.random.split(key, 4)
    H = hidden_size
    return {
        "w1": xavier(k1, input_size, H, (input_size, H)),
        "b1": jnp.zeros((1, H), jnp.float32),
        "w2": xavier(k2, H, H, (H, H)),
        "b2": jnp.zeros((1, H), jnp.float32),
        "w3": xavier(k3, H, H, (H, H)),
        "b3": jnp.zeros((1, H), jnp.float32),
        "w4": xavier(k4, H, 1, (H, 1)),
        "b4": jnp.zeros((1, 1), jnp.float32),
    }


def prepare_params(p):
    """Kernel-ready params: w1..w3 cast to bf16 (MXU operands), rest stays f32."""
    q = dict(p)
    for k in ("w1", "w2", "w3"):
        q[k] = p[k].astype(jnp.bfloat16)
    return q


def critic_reference(x, p):
    """Pure-JAX f32 reference for verification."""
    h = jnp.maximum(x @ p["w1"] + p["b1"], 0.0)
    h = jnp.maximum(h @ p["w2"] + p["b2"], 0.0)
    h = jnp.maximum(h @ p["w3"] + p["b3"], 0.0)
    return h @ p["w4"] + p["b4"]


def _check(out, ref, shape):
    assert out.shape == shape, out.shape
    err = float(jnp.max(jnp.abs(out - ref)))
    scale = float(jnp.max(jnp.abs(ref))) + 1e-6
    # bf16 MXU operands vs f32 reference -> loosened tolerance.
    assert err <= 5e-2 * scale + 2e-3, (err, scale)


if __name__ == "__main__":
    key = jax.random.PRNGKey(0)
    k_x, k_p, k_x2 = jax.random.split(key, 3)

    # Small demo shapes (single-tile path).
    batch, input_size, hidden_size = 8, 16, 32
    x = jax.random.normal(k_x, (batch, input_size), jnp.float32)
    params_f32 = init_params(k_p, input_size, hidden_size)
    kparams = prepare_params(params_f32)

    out = jax.block_until_ready(critic_forward(x, kparams))
    _check(out, critic_reference(x, params_f32), (batch, 1))

    # Larger batch exercises the multi-tile (grid > 1, tm = 1024) path.
    batch2 = 2048
    x2 = jax.random.normal(k_x2, (batch2, input_size), jnp.float32)
    out2 = jax.block_until_ready(critic_forward(x2, kparams))
    _check(out2, critic_reference(x2, params_f32), (batch2, 1))

    print("KERNEL_OK")
</pallas_src>

<mosaic_0001>
module attributes {stable_mosaic.version = 11 : i64} {
  func.func @_critic_kernel(%arg0: i32, %arg1: memref<128x16xf32, #tpu.memory_space<vmem>>, %arg2: memref<16x32xbf16, #tpu.memory_space<vmem>>, %arg3: memref<1x32xf32, #tpu.memory_space<vmem>>, %arg4: memref<32x32xbf16, #tpu.memory_space<vmem>>, %arg5: memref<1x32xf32, #tpu.memory_space<vmem>>, %arg6: memref<32x32xbf16, #tpu.memory_space<vmem>>, %arg7: memref<1x32xf32, #tpu.memory_space<vmem>>, %arg8: memref<32x1xf32, #tpu.memory_space<vmem>>, %arg9: memref<1x1xf32, #tpu.memory_space<smem>>, %arg10: memref<1x128xf32, #tpu.memory_space<vmem>>) attributes {dimension_semantics = [#tpu.dimension_semantics<parallel>], iteration_bounds = array<i64: 1>, scalar_prefetch = 0 : i64, scratch_operands = 0 : i64, tpu.core_type = #tpu.core_type<tc>, window_params = [{transform_indices = @transform_0, window_bounds = array<i64: 128, 16>}, {pipeline_mode = #tpu.pipeline_mode<synchronous>, transform_indices = @transform_1, window_bounds = array<i64: 16, 32>}, {pipeline_mode = #tpu.pipeline_mode<synchronous>, transform_indices = @transform_2, window_bounds = array<i64: 1, 32>}, {pipeline_mode = #tpu.pipeline_mode<synchronous>, transform_indices = @transform_3, window_bounds = array<i64: 32, 32>}, {pipeline_mode = #tpu.pipeline_mode<synchronous>, transform_indices = @transform_4, window_bounds = array<i64: 1, 32>}, {pipeline_mode = #tpu.pipeline_mode<synchronous>, transform_indices = @transform_5, window_bounds = array<i64: 32, 32>}, {pipeline_mode = #tpu.pipeline_mode<synchronous>, transform_indices = @transform_6, window_bounds = array<i64: 1, 32>}, {pipeline_mode = #tpu.pipeline_mode<synchronous>, transform_indices = @transform_7, window_bounds = array<i64: 32, 1>}, {transform_indices = @transform_8, window_bounds = array<i64: 1, 1>}, {transform_indices = @transform_9, window_bounds = array<i64: 1, 128>}]} {
    %c0 = arith.constant 0 : index
    %c0_0 = arith.constant 0 : index
    %0 = vector.load %arg1[%c0, %c0_0] : memref<128x16xf32, #tpu.memory_space<vmem>>, vector<128x16xf32>
    %1 = arith.truncf %0 : vector<128x16xf32> to vector<128x16xbf16>
    %c0_1 = arith.constant 0 : index
    %c0_2 = arith.constant 0 : index
    %2 = vector.load %arg2[%c0_1, %c0_2] : memref<16x32xbf16, #tpu.memory_space<vmem>>, vector<16x32xbf16>
    %cst = arith.constant dense<0.000000e+00> : vector<128x32xf32>
    %3 = tpu.matmul %1, %2, %cst {dimension_numbers = #tpu.dot_dimension_numbers<[1], [0], [0], [1], [0, 0, 1, 1], [], []>} : vector<128x16xbf16>, vector<16x32xbf16>, vector<128x32xf32> -> vector<128x32xf32>
    %c0_3 = arith.constant 0 : index
    %c0_4 = arith.constant 0 : index
    %4 = vector.load %arg3[%c0_3, %c0_4] : memref<1x32xf32, #tpu.memory_space<vmem>>, vector<1x32xf32>
    %5 = vector.broadcast %4 : vector<1x32xf32> to vector<128x32xf32>
    %6 = arith.addf %3, %5 : vector<128x32xf32>
    %cst_5 = arith.constant 0.000000e+00 : f32
    %7 = vector.broadcast %cst_5 : f32 to vector<128x32xf32>
    %8 = arith.maximumf %6, %7 : vector<128x32xf32>
    %9 = arith.truncf %8 : vector<128x32xf32> to vector<128x32xbf16>
    %c0_6 = arith.constant 0 : index
    %c0_7 = arith.constant 0 : index
    %10 = vector.load %arg4[%c0_6, %c0_7] : memref<32x32xbf16, #tpu.memory_space<vmem>>, vector<32x32xbf16>
    %cst_8 = arith.constant dense<0.000000e+00> : vector<128x32xf32>
    %11 = tpu.matmul %9, %10, %cst_8 {dimension_numbers = #tpu.dot_dimension_numbers<[1], [0], [0], [1], [0, 0, 1, 1], [], []>} : vector<128x32xbf16>, vector<32x32xbf16>, vector<128x32xf32> -> vector<128x32xf32>
    %c0_9 = arith.constant 0 : index
    %c0_10 = arith.constant 0 : index
    %12 = vector.load %arg5[%c0_9, %c0_10] : memref<1x32xf32, #tpu.memory_space<vmem>>, vector<1x32xf32>
    %13 = vector.broadcast %12 : vector<1x32xf32> to vector<128x32xf32>
    %14 = arith.addf %11, %13 : vector<128x32xf32>
    %cst_11 = arith.constant 0.000000e+00 : f32
    %15 = vector.broadcast %cst_11 : f32 to vector<128x32xf32>
    %16 = arith.maximumf %14, %15 : vector<128x32xf32>
    %17 = arith.truncf %16 : vector<128x32xf32> to vector<128x32xbf16>
    %c0_12 = arith.constant 0 : index
    %c0_13 = arith.constant 0 : index
    %18 = vector.load %arg6[%c0_12, %c0_13] : memref<32x32xbf16, #tpu.memory_space<vmem>>, vector<32x32xbf16>
    %cst_14 = arith.constant dense<0.000000e+00> : vector<128x32xf32>
    %19 = tpu.matmul %17, %18, %cst_14 {dimension_numbers = #tpu.dot_dimension_numbers<[1], [0], [0], [1], [0, 0, 1, 1], [], []>} : vector<128x32xbf16>, vector<32x32xbf16>, vector<128x32xf32> -> vector<128x32xf32>
    %c0_15 = arith.constant 0 : index
    %c0_16 = arith.constant 0 : index
    %20 = vector.load %arg7[%c0_15, %c0_16] : memref<1x32xf32, #tpu.memory_space<vmem>>, vector<1x32xf32>
    %21 = vector.broadcast %20 : vector<1x32xf32> to vector<128x32xf32>
    %22 = arith.addf %19, %21 : vector<128x32xf32>
    %cst_17 = arith.constant 0.000000e+00 : f32
    %23 = vector.broadcast %cst_17 : f32 to vector<128x32xf32>
    %24 = arith.maximumf %22, %23 : vector<128x32xf32>
    %25 = tpu.transpose %24, [1, 0] : vector<128x32xf32> -> vector<32x128xf32>
    %c0_18 = arith.constant 0 : index
    %c0_19 = arith.constant 0 : index
    %26 = vector.load %arg8[%c0_18, %c0_19] : memref<32x1xf32, #tpu.memory_space<vmem>>, vector<32x1xf32>
    %27 = vector.broadcast %26 : vector<32x1xf32> to vector<32x128xf32>
    %28 = arith.mulf %25, %27 : vector<32x128xf32>
    %cst_20 = arith.constant dense<0.000000e+00> : vector<128xf32>
    %29 = vector.multi_reduction <add>, %28, %cst_20 [0] : vector<32x128xf32> to vector<128xf32>
    %30 = vector.shape_cast %29 : vector<128xf32> to vector<1x128xf32>
    %c0_21 = arith.constant 0 : index
    %c0_22 = arith.constant 0 : index
    %31 = memref.load %arg9[%c0_21, %c0_22] : memref<1x1xf32, #tpu.memory_space<smem>>
    %32 = vector.broadcast %31 : f32 to vector<1x128xf32>
    %33 = arith.addf %30, %32 : vector<1x128xf32>
    %c0_23 = arith.constant 0 : index
    %c0_24 = arith.constant 0 : index
    %34 = vector.load %arg10[%c0_23, %c0_24] : memref<1x128xf32, #tpu.memory_space<vmem>>, vector<1x128xf32>
    tpu.vector_store %arg10[%c0_23, %c0_24], %33 {strides = array<i32>} : memref<1x128xf32, #tpu.memory_space<vmem>>, vector<1x128xf32>,
    return
  }
  func.func @transform_0(%arg0: i32) -> (i32, i32) {
    %c0_i32 = arith.constant 0 : i32
    %c0_i32_0 = arith.constant 0 : i32
    return %arg0, %c0_i32 : i32, i32
  }
  func.func @transform_1(%arg0: i32) -> (i32, i32) {
    %c0_i32 = arith.constant 0 : i32
    %c0_i32_0 = arith.constant 0 : i32
    %c0_i32_1 = arith.constant 0 : i32
    return %c0_i32, %c0_i32_0 : i32, i32
  }
  func.func @transform_2(%arg0: i32) -> (i32, i32) {
    %c0_i32 = arith.constant 0 : i32
    %c0_i32_0 = arith.constant 0 : i32
    %c0_i32_1 = arith.constant 0 : i32
    return %c0_i32, %c0_i32_0 : i32, i32
  }
  func.func @transform_3(%arg0: i32) -> (i32, i32) {
    %c0_i32 = arith.constant 0 : i32
    %c0_i32_0 = arith.constant 0 : i32
    %c0_i32_1 = arith.constant 0 : i32
    return %c0_i32, %c0_i32_0 : i32, i32
  }
  func.func @transform_4(%arg0: i32) -> (i32, i32) {
    %c0_i32 = arith.constant 0 : i32
    %c0_i32_0 = arith.constant 0 : i32
    %c0_i32_1 = arith.constant 0 : i32
    return %c0_i32, %c0_i32_0 : i32, i32
  }
  func.func @transform_5(%arg0: i32) -> (i32, i32) {
    %c0_i32 = arith.constant 0 : i32
    %c0_i32_0 = arith.constant 0 : i32
    %c0_i32_1 = arith.constant 0 : i32
    return %c0_i32, %c0_i32_0 : i32, i32
  }
  func.func @transform_6(%arg0: i32) -> (i32, i32) {
    %c0_i32 = arith.constant 0 : i32
    %c0_i32_0 = arith.constant 0 : i32
    %c0_i32_1 = arith.constant 0 : i32
    return %c0_i32, %c0_i32_0 : i32, i32
  }
  func.func @transform_7(%arg0: i32) -> (i32, i32) {
    %c0_i32 = arith.constant 0 : i32
    %c0_i32_0 = arith.constant 0 : i32
    %c0_i32_1 = arith.constant 0 : i32
    return %c0_i32, %c0_i32_0 : i32, i32
  }
  func.func @transform_8(%arg0: i32) -> (i32, i32) {
    %c0_i32 = arith.constant 0 : i32
    %c0_i32_0 = arith.constant 0 : i32
    %c0_i32_1 = arith.constant 0 : i32
    return %c0_i32, %c0_i32_0 : i32, i32
  }
  func.func @transform_9(%arg0: i32) -> (i32, i32) {
    %c0_i32 = arith.constant 0 : i32
    %c0_i32_0 = arith.constant 0 : i32
    return %arg0, %c0_i32 : i32, i32
  }
}

</mosaic_0001>

<llo_original>
// kernel: critic_forward.1
$region0: #{critic_forward.1}
  #allocation0 [shape = 'u32[]', space=smem, size = 0x4, offset = 0x4, fixed_abs, tag = 'smem constant byte address 0x4 - core index']
  #allocation1 [shape = 'u32[72,128]{1,0:T(1,128)}', space=vmem, size = 0x9000, scoped, tag = 'internal scratch']
  #allocation2 [shape = 'f32[1,1]{1,0:T(1,128)S(6)}', space=smem, size = 0x200, scoped, tag = 'scoped memory for critic_forward.1']
  %s0 = inlined_call_operand.vmem [shape: f32[128,16], index: 0, kind: input, shape index: {}]
  %s1 = inlined_call_operand.vmem [shape: bf16[16,32], index: 1, kind: input, shape index: {}]
  %s2 = inlined_call_operand.vmem [shape: f32[1,32], index: 2, kind: input, shape index: {}]
  %s3 = inlined_call_operand.vmem [shape: bf16[32,32], index: 3, kind: input, shape index: {}]
  %s4 = inlined_call_operand.vmem [shape: f32[1,32], index: 4, kind: input, shape index: {}]
  %s5 = inlined_call_operand.vmem [shape: bf16[32,32], index: 5, kind: input, shape index: {}]
  %s6 = inlined_call_operand.vmem [shape: f32[1,32], index: 6, kind: input, shape index: {}]
  %s7 = inlined_call_operand.vmem [shape: f32[32,1], index: 7, kind: input, shape index: {}]
  %s8 = inlined_call_operand.<no memory space> [shape: f32[1,1], index: 8, kind: input, shape index: {}]
  %s9 = inlined_call_operand.vmem [shape: f32[1,128], index: 9, kind: output, shape index: {}]
  %s10 = sld [smem:[#allocation0]]
  $region46: #{critic_forward.1} parent=0
    _
  %s12 = ssub.s32 1, %s10
  %s13 = scalar_select 0, %s12, %s10
  %14 = sst [smem:[#allocation2]] %s8
  // Predicated region
  $region2: #{critic_forward.1} parent=0 // pred_check
    _
  $region3: #{critic_forward.1} parent=0 // pred_check_branch
    %16 = sbr.rel (0) target = $region5
  $region4: #{critic_forward.1} parent=0 // pred_region
    _
  $region5: #{critic_forward.1} parent=0 // pred_fallthru
    _
  // Predicated region
  $region6: #{critic_forward.1} parent=0 // pred_check
    _
  $region7: #{critic_forward.1} parent=0 // pred_check_branch
    %18 = sbr.rel (0) target = $region9
  $region8: #{critic_forward.1} parent=0 // pred_region
    _
  $region9: #{critic_forward.1} parent=0 // pred_fallthru
    _
  // Predicated region
  $region10: #{critic_forward.1} parent=0 // pred_check
    _
  $region11: #{critic_forward.1} parent=0 // pred_check_branch
    %20 = sbr.rel (0) target = $region13
  $region12: #{critic_forward.1} parent=0 // pred_region
    _
  $region13: #{critic_forward.1} parent=0 // pred_fallthru
    _
  // Predicated region
  $region14: #{critic_forward.1} parent=0 // pred_check
    _
  $region15: #{critic_forward.1} parent=0 // pred_check_branch
    %22 = sbr.rel (0) target = $region17
  $region16: #{critic_forward.1} parent=0 // pred_region
    _
  $region17: #{critic_forward.1} parent=0 // pred_fallthru
    _
  // Predicated region
  $region18: #{critic_forward.1} parent=0 // pred_check
    _
  $region19: #{critic_forward.1} parent=0 // pred_check_branch
    %24 = sbr.rel (0) target = $region21
  $region20: #{critic_forward.1} parent=0 // pred_region
    _
  $region21: #{critic_forward.1} parent=0 // pred_fallthru
    _
  // Predicated region
  $region22: #{critic_forward.1} parent=0 // pred_check
    _
  $region23: #{critic_forward.1} parent=0 // pred_check_branch
    %26 = sbr.rel (0) target = $region25
  $region24: #{critic_forward.1} parent=0 // pred_region
    _
  $region25: #{critic_forward.1} parent=0 // pred_fallthru
    _
  // Predicated region
  $region26: #{critic_forward.1} parent=0 // pred_check
    _
  $region27: #{critic_forward.1} parent=0 // pred_check_branch
    %28 = sbr.rel (0) target = $region29
  $region28: #{critic_forward.1} parent=0 // pred_region
    _
  $region29: #{critic_forward.1} parent=0 // pred_fallthru
    _
  // Predicated region
  $region30: #{critic_forward.1} parent=0 // pred_check
    _
  $region31: #{critic_forward.1} parent=0 // pred_check_branch
    %30 = sbr.rel (0) target = $region33
  $region32: #{critic_forward.1} parent=0 // pred_region
    _
  $region33: #{critic_forward.1} parent=0 // pred_fallthru
    _
  // Predicated region
  $region34: #{critic_forward.1} parent=0 // pred_check
    _
  $region35: #{critic_forward.1} parent=0 // pred_check_branch
    %32 = sbr.rel (0) target = $region37
  $region36: #{critic_forward.1} parent=0 // pred_region
    _
  $region37: #{critic_forward.1} parent=0 // pred_fallthru
    _
  %v34 = vld [vmem:[%s0] sm:$0xff]
  %v35 = vld [vmem:[%s0 + $0x8] sm:$0xff]
  %v36 = vld [vmem:[%s0 + $0x10] sm:$0xff]
  %v37 = vld [vmem:[%s0 + $0x18] sm:$0xff]
  %v38 = vld [vmem:[%s0 + $0x20] sm:$0xff]
  %v39 = vld [vmem:[%s0 + $0x28] sm:$0xff]
  %v40 = vld [vmem:[%s0 + $0x30] sm:$0xff]
  %v41 = vld [vmem:[%s0 + $0x38] sm:$0xff]
  %v42 = vld [vmem:[%s0 + $0x40] sm:$0xff]
  %v43 = vld [vmem:[%s0 + $0x48] sm:$0xff]
  %v44 = vld [vmem:[%s0 + $0x50] sm:$0xff]
  %v45 = vld [vmem:[%s0 + $0x58] sm:$0xff]
  %v46 = vld [vmem:[%s0 + $0x60] sm:$0xff]
  %v47 = vld [vmem:[%s0 + $0x68] sm:$0xff]
  %v48 = vld [vmem:[%s0 + $0x70] sm:$0xff]
  %v49 = vld [vmem:[%s0 + $0x78] sm:$0xff]
  %v50 = vpack.c.bf16 %v35, %v34
  %v51 = vpack.c.bf16 %v37, %v36
  %v52 = vpack.c.bf16 %v39, %v38
  %v53 = vpack.c.bf16 %v41, %v40
  %v54 = vpack.c.bf16 %v43, %v42
  %v55 = vpack.c.bf16 %v45, %v44
  %v56 = vpack.c.bf16 %v47, %v46
  %v57 = vpack.c.bf16 %v49, %v48
  %v58 = vld [vmem:[%s1] sm:$0xf]
  %v59 = vld [vmem:[%s1 + $0x4] sm:$0xf]
  %v60 = vld [vmem:[%s2] sm:$0x1]
  %v62 = vperm.slane %v60, 0
  %v66 = vunpack.c.l.b16 %v58
  %v67 = vunpack.c.l.b16 %v59
  %v68 = vpack.c.b16 %v67, %v66
  %vm70 = vcmask 130048
  %v72 = vsel %vm70, %v50, 0
  %v75 = vsel %vm70, %v51, 0
  %v78 = vsel %vm70, %v52, 0
  %v81 = vsel %vm70, %v53, 0
  %v84 = vsel %vm70, %v54, 0
  %v87 = vsel %vm70, %v55, 0
  %v90 = vsel %vm70, %v56, 0
  %v93 = vsel %vm70, %v57, 0
  %95 = vmatpush.bf16.msra.mxu0 0
  %96 = vmatpush.bf16.msra.mxu0 0
  %97 = vmatpush.bf16.msra.mxu0 0
  %98 = vmatpush.bf16.msra.mxu0 0
  %99 = vmatpush.bf16.msra.mxu0 0
  %100 = vmatpush.bf16.msra.mxu0 0
  %101 = vmatpush.bf16.msra.mxu0 0
  %102 = vmatpush.bf16.msra.mxu0 %v68
  %103 = vmatmul.bf16.gmra.mxu0 %v72
  %v104 = vpop.f32.mrf.mxu0
  %v105 = vadd.f32 %v62, %v104
  %v106 = vpop.f32.mrf.mxu0
  %v107 = vadd.f32 %v62, %v106
  %108 = vmatmul.bf16.gmra.mxu0 %v75
  %v109 = vpop.f32.mrf.mxu0
  %v110 = vadd.f32 %v62, %v109
  %v111 = vpop.f32.mrf.mxu0
  %v112 = vadd.f32 %v62, %v111
  %113 = vmatmul.bf16.gmra.mxu0 %v78
  %v114 = vpop.f32.mrf.mxu0
  %v115 = vadd.f32 %v62, %v114
  %v116 = vpop.f32.mrf.mxu0
  %v117 = vadd.f32 %v62, %v116
  %118 = vmatmul.bf16.gmra.mxu0 %v81
  %v119 = vpop.f32.mrf.mxu0
  %v120 = vadd.f32 %v62, %v119
  %v121 = vpop.f32.mrf.mxu0
  %v122 = vadd.f32 %v62, %v121
  %123 = vmatmul.bf16.gmra.mxu0 %v84
  %v124 = vpop.f32.mrf.mxu0
  %v125 = vadd.f32 %v62, %v124
  %v126 = vpop.f32.mrf.mxu0
  %v127 = vadd.f32 %v62, %v126
  %128 = vmatmul.bf16.gmra.mxu0 %v87
  %v129 = vpop.f32.mrf.mxu0
  %v130 = vadd.f32 %v62, %v129
  %v131 = vpop.f32.mrf.mxu0
  %v132 = vadd.f32 %v62, %v131
  %133 = vmatmul.bf16.gmra.mxu0 %v90
  %v134 = vpop.f32.mrf.mxu0
  %v135 = vadd.f32 %v62, %v134
  %v136 = vpop.f32.mrf.mxu0
  %v137 = vadd.f32 %v62, %v136
  %138 = vmatmul.bf16.gmra.mxu0 %v93
  %v139 = vpop.f32.mrf.mxu0
  %v140 = vadd.f32 %v62, %v139
  %v141 = vpop.f32.mrf.mxu0
  %v142 = vadd.f32 %v62, %v141
  %143 = vdwg.mxu0
  %v144 = vmax.f32 %v105, 0.0
  %v145 = vmax.f32 %v107, 0.0
  %v146 = vmax.f32 %v110, 0.0
  %v147 = vmax.f32 %v112, 0.0
  %v148 = vmax.f32 %v115, 0.0
  %v149 = vmax.f32 %v117, 0.0
  %v150 = vmax.f32 %v120, 0.0
  %v151 = vmax.f32 %v122, 0.0
  %v152 = vmax.f32 %v125, 0.0
  %v153 = vmax.f32 %v127, 0.0
  %v154 = vmax.f32 %v130, 0.0
  %v155 = vmax.f32 %v132, 0.0
  %v156 = vmax.f32 %v135, 0.0
  %v157 = vmax.f32 %v137, 0.0
  %v158 = vmax.f32 %v140, 0.0
  %v159 = vmax.f32 %v142, 0.0
  %v160 = vpack.c.bf16 %v145, %v144
  %v161 = vpack.c.bf16 %v147, %v146
  %v162 = vpack.c.bf16 %v149, %v148
  %v163 = vpack.c.bf16 %v151, %v150
  %v164 = vpack.c.bf16 %v153, %v152
  %v165 = vpack.c.bf16 %v155, %v154
  %v166 = vpack.c.bf16 %v157, %v156
  %v167 = vpack.c.bf16 %v159, %v158
  %v168 = vld [vmem:[%s3] sm:$0xf]
  %v169 = vld [vmem:[%s3 + $0x4] sm:$0xf]
  %v170 = vld [vmem:[%s3 + $0x8] sm:$0xf]
  %v171 = vld [vmem:[%s3 + $0xc] sm:$0xf]
  %v172 = vld [vmem:[%s4] sm:$0x1]
  %v174 = vperm.slane %v172, 0
  %v180 = vunpack.c.l.b16 %v168
  %v181 = vunpack.c.l.b16 %v169
  %v182 = vunpack.c.l.b16 %v170
  %v183 = vunpack.c.l.b16 %v171
  %v184 = vpack.c.b16 %v181, %v180
  %v185 = vpack.c.b16 %v183, %v182
  %vm188 = vcmask 261120
  %v190 = vsel %vm188, %v160, 0
  %v193 = vsel %vm188, %v161, 0
  %v196 = vsel %vm188, %v162, 0
  %v199 = vsel %vm188, %v163, 0
  %v202 = vsel %vm188, %v164, 0
  %v205 = vsel %vm188, %v165, 0
  %v208 = vsel %vm188, %v166, 0
  %v211 = vsel %vm188, %v167, 0
  %213 = vmatpush.bf16.msra.mxu0 0
  %214 = vmatpush.bf16.msra.mxu0 0
  %215 = vmatpush.bf16.msra.mxu0 0
  %216 = vmatpush.bf16.msra.mxu0 0
  %217 = vmatpush.bf16.msra.mxu0 0
  %218 = vmatpush.bf16.msra.mxu0 0
  %219 = vmatpush.bf16.msra.mxu0 %v185
  %220 = vmatpush.bf16.msra.mxu0 %v184
  %221 = vmatmul.bf16.gmra.mxu0 %v190
  %v222 = vpop.f32.mrf.mxu0
  %v223 = vadd.f32 %v174, %v222
  %v224 = vpop.f32.mrf.mxu0
  %v225 = vadd.f32 %v174, %v224
  %226 = vmatmul.bf16.gmra.mxu0 %v193
  %v227 = vpop.f32.mrf.mxu0
  %v228 = vadd.f32 %v174, %v227
  %v229 = vpop.f32.mrf.mxu0
  %v230 = vadd.f32 %v174, %v229
  %231 = vmatmul.bf16.gmra.mxu0 %v196
  %v232 = vpop.f32.mrf.mxu0
  %v233 = vadd.f32 %v174, %v232
  %v234 = vpop.f32.mrf.mxu0
  %v235 = vadd.f32 %v174, %v234
  %236 = vmatmul.bf16.gmra.mxu0 %v199
  %v237 = vpop.f32.mrf.mxu0
  %v238 = vadd.f32 %v174, %v237
  %v239 = vpop.f32.mrf.mxu0
  %v240 = vadd.f32 %v174, %v239
  %241 = vmatmul.bf16.gmra.mxu0 %v202
  %v242 = vpop.f32.mrf.mxu0
  %v243 = vadd.f32 %v174, %v242
  %v244 = vpop.f32.mrf.mxu0
  %v245 = vadd.f32 %v174, %v244
  %246 = vmatmul.bf16.gmra.mxu0 %v205
  %v247 = vpop.f32.mrf.mxu0
  %v248 = vadd.f32 %v174, %v247
  %v249 = vpop.f32.mrf.mxu0
  %v250 = vadd.f32 %v174, %v249
  %251 = vmatmul.bf16.gmra.mxu0 %v208
  %v252 = vpop.f32.mrf.mxu0
  %v253 = vadd.f32 %v174, %v252
  %v254 = vpop.f32.mrf.mxu0
  %v255 = vadd.f32 %v174, %v254
  %256 = vmatmul.bf16.gmra.mxu0 %v211
  %v257 = vpop.f32.mrf.mxu0
  %v258 = vadd.f32 %v174, %v257
  %v259 = vpop.f32.mrf.mxu0
  %v260 = vadd.f32 %v174, %v259
  %261 = vdwg.mxu0
  %v262 = vmax.f32 %v223, 0.0
  %v263 = vmax.f32 %v225, 0.0
  %v264 = vmax.f32 %v228, 0.0
  %v265 = vmax.f32 %v230, 0.0
  %v266 = vmax.f32 %v233, 0.0
  %v267 = vmax.f32 %v235, 0.0
  %v268 = vmax.f32 %v238, 0.0
  %v269 = vmax.f32 %v240, 0.0
  %v270 = vmax.f32 %v243, 0.0
  %v271 = vmax.f32 %v245, 0.0
  %v272 = vmax.f32 %v248, 0.0
  %v273 = vmax.f32 %v250, 0.0
  %v274 = vmax.f32 %v253, 0.0
  %v275 = vmax.f32 %v255, 0.0
  %v276 = vmax.f32 %v258, 0.0
  %v277 = vmax.f32 %v260, 0.0
  %v278 = vpack.c.bf16 %v263, %v262
  %v279 = vpack.c.bf16 %v265, %v264
  %v280 = vpack.c.bf16 %v267, %v266
  %v281 = vpack.c.bf16 %v269, %v268
  %v282 = vpack.c.bf16 %v271, %v270
  %v283 = vpack.c.bf16 %v273, %v272
  %v284 = vpack.c.bf16 %v275, %v274
  %v285 = vpack.c.bf16 %v277, %v276
  %v286 = vld [vmem:[%s5] sm:$0xf]
  %v287 = vld [vmem:[%s5 + $0x4] sm:$0xf]
  %v288 = vld [vmem:[%s5 + $0x8] sm:$0xf]
  %v289 = vld [vmem:[%s5 + $0xc] sm:$0xf]
  %v290 = vld [vmem:[%s6] sm:$0x1]
  %v292 = vperm.slane %v290, 0
  %v298 = vunpack.c.l.b16 %v286
  %v299 = vunpack.c.l.b16 %v287
  %v300 = vunpack.c.l.b16 %v288
  %v301 = vunpack.c.l.b16 %v289
  %v302 = vpack.c.b16 %v299, %v298
  %v303 = vpack.c.b16 %v301, %v300
  %v307 = vsel %vm188, %v278, 0
  %v310 = vsel %vm188, %v279, 0
  %v313 = vsel %vm188, %v280, 0
  %v316 = vsel %vm188, %v281, 0
  %v319 = vsel %vm188, %v282, 0
  %v322 = vsel %vm188, %v283, 0
  %v325 = vsel %vm188, %v284, 0
  %v328 = vsel %vm188, %v285, 0
  %330 = vmatpush.bf16.msra.mxu0 0
  %331 = vmatpush.bf16.msra.mxu0 0
  %332 = vmatpush.bf16.msra.mxu0 0
  %333 = vmatpush.bf16.msra.mxu0 0
  %334 = vmatpush.bf16.msra.mxu0 0
  %335 = vmatpush.bf16.msra.mxu0 0
  %336 = vmatpush.bf16.msra.mxu0 %v303
  %337 = vmatpush.bf16.msra.mxu0 %v302
  %338 = vmatmul.bf16.gmra.mxu0 %v307
  %v339 = vpop.f32.mrf.mxu0
  %v340 = vadd.f32 %v292, %v339
  %v341 = vpop.f32.mrf.mxu0
  %v342 = vadd.f32 %v292, %v341
  %343 = vmatmul.bf16.gmra.mxu0 %v310
  %v344 = vpop.f32.mrf.mxu0
  %v345 = vadd.f32 %v292, %v344
  %v346 = vpop.f32.mrf.mxu0
  %v347 = vadd.f32 %v292, %v346
  %348 = vmatmul.bf16.gmra.mxu0 %v313
  %v349 = vpop.f32.mrf.mxu0
  %v350 = vadd.f32 %v292, %v349
  %v351 = vpop.f32.mrf.mxu0
  %v352 = vadd.f32 %v292, %v351
  %353 = vmatmul.bf16.gmra.mxu0 %v316
  %v354 = vpop.f32.mrf.mxu0
  %v355 = vadd.f32 %v292, %v354
  %v356 = vpop.f32.mrf.mxu0
  %v357 = vadd.f32 %v292, %v356
  %358 = vmatmul.bf16.gmra.mxu0 %v319
  %v359 = vpop.f32.mrf.mxu0
  %v360 = vadd.f32 %v292, %v359
  %v361 = vpop.f32.mrf.mxu0
  %v362 = vadd.f32 %v292, %v361
  %363 = vmatmul.bf16.gmra.mxu0 %v322
  %v364 = vpop.f32.mrf.mxu0
  %v365 = vadd.f32 %v292, %v364
  %v366 = vpop.f32.mrf.mxu0
  %v367 = vadd.f32 %v292, %v366
  %368 = vmatmul.bf16.gmra.mxu0 %v325
  %v369 = vpop.f32.mrf.mxu0
  %v370 = vadd.f32 %v292, %v369
  %v371 = vpop.f32.mrf.mxu0
  %v372 = vadd.f32 %v292, %v371
  %373 = vmatmul.bf16.gmra.mxu0 %v328
  %v374 = vpop.f32.mrf.mxu0
  %v375 = vadd.f32 %v292, %v374
  %v376 = vpop.f32.mrf.mxu0
  %v377 = vadd.f32 %v292, %v376
  %378 = vdwg.mxu0
  %v379 = vmax.f32 %v340, 0.0
  %v380 = vmax.f32 %v342, 0.0
  %v381 = vmax.f32 %v345, 0.0
  %v382 = vmax.f32 %v347, 0.0
  %v383 = vmax.f32 %v350, 0.0
  %v384 = vmax.f32 %v352, 0.0
  %v385 = vmax.f32 %v355, 0.0
  %v386 = vmax.f32 %v357, 0.0
  %v387 = vmax.f32 %v360, 0.0
  %v388 = vmax.f32 %v362, 0.0
  %v389 = vmax.f32 %v365, 0.0
  %v390 = vmax.f32 %v367, 0.0
  %v391 = vmax.f32 %v370, 0.0
  %v392 = vmax.f32 %v372, 0.0
  %v393 = vmax.f32 %v375, 0.0
  %v394 = vmax.f32 %v377, 0.0
  %395 = vxpose.xlu0.b32.start [1/16] %v379, 128
  %396 = vxpose.xlu0.b32.cont [2/16] %v380, 128
  %397 = vxpose.xlu0.b32.cont [3/16] %v381, 128
  %398 = vxpose.xlu0.b32.cont [4/16] %v382, 128
  %399 = vxpose.xlu0.b32.cont [5/16] %v383, 128
  %400 = vxpose.xlu0.b32.cont [6/16] %v384, 128
  %401 = vxpose.xlu0.b32.cont [7/16] %v385, 128
  %402 = vxpose.xlu0.b32.cont [8/16] %v386, 128
  %403 = vxpose.xlu0.b32.cont [9/16] %v387, 128
  %404 = vxpose.xlu0.b32.cont [10/16] %v388, 128
  %405 = vxpose.xlu0.b32.cont [11/16] %v389, 128
  %406 = vxpose.xlu0.b32.cont [12/16] %v390, 128
  %407 = vxpose.xlu0.b32.cont [13/16] %v391, 128
  %408 = vxpose.xlu0.b32.cont [14/16] %v392, 128
  %409 = vxpose.xlu0.b32.cont [15/16] %v393, 128
  %410 = vxpose.xlu0.b32.end [16/16] %v394, 128
  %v411 = vpop.trf.xlu0
  %v412 = vpop.trf.xlu0
  %v413 = vpop.trf.xlu0
  %v414 = vpop.trf.xlu0
  %v415 = vpop.trf.xlu0
  %v416 = vpop.trf.xlu0
  %v417 = vpop.trf.xlu0
  %v418 = vpop.trf.xlu0
  %v419 = vpop.trf.xlu0
  %v420 = vpop.trf.xlu0
  %v421 = vpop.trf.xlu0
  %v422 = vpop.trf.xlu0
  %v423 = vpop.trf.xlu0
  %v424 = vpop.trf.xlu0
  %v425 = vpop.trf.xlu0
  %v426 = vpop.trf.xlu0
  %v427 = vld [vmem:[%s7] sm:$0xff]
  %v428 = vld [vmem:[%s7 + $0x8] sm:$0xff]
  %v429 = vld [vmem:[%s7 + $0x10] sm:$0xff]
  %v430 = vld [vmem:[%s7 + $0x18] sm:$0xff]
  %432 = vset.pattern.permute.xlu0 0
  %433 = vperm.xlu0 %432, %v427
  %v434 = vpop.permute.xlu0 %433
  %437 = vset.pattern.permute.xlu0 0
  %438 = vperm.xlu0 %437, %v428
  %v439 = vpop.permute.xlu0 %438
  %442 = vset.pattern.permute.xlu0 0
  %443 = vperm.xlu0 %442, %v429
  %v444 = vpop.permute.xlu0 %443
  %447 = vset.pattern.permute.xlu0 0
  %448 = vperm.xlu0 %447, %v430
  %v449 = vpop.permute.xlu0 %448
  %v451 = vmul.f32 %v411, %v434
  %v452 = vmul.f32 %v412, %v439
  %v453 = vmul.f32 %v413, %v444
  %v454 = vmul.f32 %v414, %v449
  %v455 = vadd.f32 %v451, %v452
  %v456 = vadd.f32 %v455, %v453
  %v457 = vadd.f32 %v456, %v454
  %v458 = vrot.slane %v457, 4
  %v459 = vadd.f32 %v457, %v458
  %v460 = vrot.slane %v459, 2
  %v461 = vadd.f32 %v459, %v460
  %v462 = vrot.slane %v461, 1
  %v463 = vadd.f32 %v461, %v462
  %s464 = sld [smem:[#allocation2]]
  %v465 = vstv %s464
  %v466 = vadd.f32 %v463, %v465
  %467 = vst [vmem:[%s9] sm:$0x1] %v466
  // Predicated region
  $region38: #{critic_forward.1} parent=0 // pred_check
    _
  $region39: #{critic_forward.1} parent=0 // pred_check_branch
    %469 = sbr.rel (0) target = $region41
  $region40: #{critic_forward.1} parent=0 // pred_region
    _
  $region41: #{critic_forward.1} parent=0 // pred_fallthru
    _
  // Predicated region
  $region42: #{critic_forward.1} parent=0 // pred_check
    _
  $region43: #{critic_forward.1} parent=0 // pred_check_branch
    %471 = sbr.rel (0) target = $region45
  $region44: #{critic_forward.1} parent=0 // pred_region
    _
  $region45: #{critic_forward.1} parent=0 // pred_fallthru
    _

</llo_original>
